<compile_context>
chip_gen: v5e
topology: v5e:2x2
jax: 0.10.0
libtpu: 0.0.40
codegen_flags: <defaults>
</compile_context>

<pallas_src>
import functools

import jax
import jax.numpy as jnp
from jax.experimental import pallas as pl
from jax.experimental.pallas import tpu as pltpu


# --------------------------------------------------------------------------
# Fused kernel: instance (cross-entropy) loss + global alignment loss.
# --------------------------------------------------------------------------
def _fused_loss_kernel(labels2b_ref, labels_row_ref, embeds_ref, sim_ref, w_ref,
                       inst_ref, align_ref,
                       m_sc, l_sc, tgt_sc,
                       *, alpha, beta, scale_pos, scale_neg, class_tile):
    c = pl.program_id(0)
    n_c = pl.num_programs(0)
    two_b = embeds_ref.shape[0]
    b = two_b // 2

    # ---- init running logsumexp stats (first class tile) ------------------
    @pl.when(c == 0)
    def _():
        m_sc[...] = jnp.full_like(m_sc, -jnp.inf)
        l_sc[...] = jnp.zeros_like(l_sc)
        tgt_sc[...] = jnp.zeros_like(tgt_sc)

    # ---- instance loss: stacked (2B, D) @ (D, tile) on the MXU -------------
    # No explicit f32 up-cast of the operands; f32 accumulation is preserved
    # by preferred_element_type (works for f32 or bf16 storage).
    logits = jnp.dot(embeds_ref[...], w_ref[...],
                     preferred_element_type=jnp.float32)            # (2B, tile)

    labels = labels2b_ref[...]                                      # (2B, 1) int32
    class_ids = (jax.lax.broadcasted_iota(jnp.int32, logits.shape, 1)
                 + c * class_tile)
    # target logit without materializing a float one-hot
    tgt_sc[...] += jnp.sum(jnp.where(class_ids == labels, logits, 0.0),
                           axis=-1, keepdims=True)

    # online logsumexp update
    m_old = m_sc[...]
    m_new = jnp.maximum(m_old, jnp.max(logits, axis=-1, keepdims=True))
    l_sc[...] = (l_sc[...] * jnp.exp(m_old - m_new)
                 + jnp.sum(jnp.exp(logits - m_new), axis=-1, keepdims=True))
    m_sc[...] = m_new

    @pl.when(c == n_c - 1)
    def _():
        lse = m_sc[...] + jnp.log(l_sc[...])                        # (2B, 1)
        # sum over 2B rows / B  ==  mean-CE(visual) + mean-CE(textual)
        # TODO(synk): losses.cross_entropy_loss may apply label smoothing
        # (epsilon) depending on config; plain CE (epsilon=0) implemented here.
        inst_ref[0, 0] = jnp.sum(lse - tgt_sc[...]) * (1.0 / b)

    # ---- global alignment (ranking) loss: independent of class tiling ------
    @pl.when(c == 0)
    def _():
        sim = sim_ref[...].astype(jnp.float32)                      # (B, B)
        pos_mask = labels[:b, :] == labels_row_ref[...]             # (B,1)==(1,B)
        # select the softplus argument first -> one transcendental per element
        z = jnp.where(pos_mask,
                      (-scale_pos) * (sim - alpha),
                      scale_neg * (sim - beta))
        # numerically stable softplus: max(z, 0) + log(1 + exp(-|z|))
        elem = jnp.maximum(z, 0.0) + jnp.log(1.0 + jnp.exp(-jnp.abs(z)))
        align_ref[0, 0] = jnp.sum(elem) * (2.0 / b)


# --------------------------------------------------------------------------
# Wrapper
# --------------------------------------------------------------------------
def _pick_class_tile(num_classes, feat_dim, dtype_bytes,
                     w_vmem_budget=24 * 1024 * 1024):
    """Largest 128-multiple tile of C s.t. double-buffered W tile fits budget."""
    if num_classes % 128 != 0:
        return num_classes                       # small / odd C: single tile
    max_tn = w_vmem_budget // (2 * feat_dim * dtype_bytes)
    max_tn = max(128, (max_tn // 128) * 128)
    if num_classes <= max_tn:
        return num_classes
    tn = (min(max_tn, num_classes) // 128) * 128
    while tn >= 128 and num_classes % tn != 0:
        tn -= 128
    return tn if tn >= 128 else num_classes


def loss_computation_forward(projection, visual_embed, textual_embed,
                             similarity, labels,
                             alpha=0.6, beta=0.4,
                             scale_pos=10.0, scale_neg=40.0):
    """Equivalent of LossComputation.forward (captions -> labels done as glue)."""
    B, D = visual_embed.shape
    C = projection.shape[1]
    tn = _pick_class_tile(C, D, jnp.dtype(projection.dtype).itemsize)
    n_c = C // tn

    # stack modalities -> single matmul per W tile; W pushed to MXU once
    embeds = jnp.concatenate([visual_embed, textual_embed], axis=0)   # (2B, D)
    labels_i32 = labels.astype(jnp.int32)
    labels2b = jnp.concatenate([labels_i32, labels_i32]).reshape(2 * B, 1)
    labels_row = labels_i32.reshape(1, B)

    kernel = functools.partial(
        _fused_loss_kernel,
        # plain Python floats -> baked-in literals (no captured f32[] consts)
        alpha=float(alpha), beta=float(beta),
        scale_pos=float(scale_pos), scale_neg=float(scale_neg),
        class_tile=int(tn))

    grid_spec = pltpu.PrefetchScalarGridSpec(
        num_scalar_prefetch=0,
        grid=(n_c,),
        in_specs=[
            pl.BlockSpec((2 * B, 1), lambda c: (0, 0)),   # labels (vector compare)
            pl.BlockSpec((1, B), lambda c: (0, 0)),       # labels row
            pl.BlockSpec((2 * B, D), lambda c: (0, 0)),   # stacked embeds
            pl.BlockSpec((B, B), lambda c: (0, 0)),       # similarity
            pl.BlockSpec((D, tn), lambda c: (0, c)),      # W tile (pipelined DMA)
        ],
        out_specs=[
            pl.BlockSpec((1, 1), lambda c: (0, 0),
                         memory_space=pltpu.MemorySpace.SMEM),
            pl.BlockSpec((1, 1), lambda c: (0, 0),
                         memory_space=pltpu.MemorySpace.SMEM),
        ],
        scratch_shapes=[
            pltpu.VMEM((2 * B, 1), jnp.float32),          # running max
            pltpu.VMEM((2 * B, 1), jnp.float32),          # running sum-exp
            pltpu.VMEM((2 * B, 1), jnp.float32),          # target-logit accum
        ],
    )

    inst, align = pl.pallas_call(
        kernel,
        grid_spec=grid_spec,
        out_shape=(jax.ShapeDtypeStruct((1, 1), jnp.float32),
                   jax.ShapeDtypeStruct((1, 1), jnp.float32)),
        compiler_params=pltpu.CompilerParams(
            dimension_semantics=("arbitrary",)),          # C is a reduction axis
    )(labels2b, labels_row, embeds, similarity, projection)

    return {"instance_loss": inst[0, 0], "global_align_loss": align[0, 0]}


# --------------------------------------------------------------------------
# Demo / smoke test
# --------------------------------------------------------------------------
if __name__ == "__main__":
    B = 8
    FEATURE_SIZE = 32
    NUM_CLASSES = 16

    key = jax.random.PRNGKey(0)
    k_proj, k_v, k_t, k_lab = jax.random.split(key, 4)

    # Xavier-uniform init of projection (D, C), gain=1
    bound = (6.0 / (FEATURE_SIZE + NUM_CLASSES)) ** 0.5
    projection = jax.random.uniform(k_proj, (FEATURE_SIZE, NUM_CLASSES),
                                    jnp.float32, -bound, bound)

    visual_embed = jax.random.normal(k_v, (B, FEATURE_SIZE), jnp.float32)
    textual_embed = jax.random.normal(k_t, (B, FEATURE_SIZE), jnp.float32)

    # similarity is normally cosine similarity between the two modalities
    v_n = visual_embed / jnp.linalg.norm(visual_embed, axis=-1, keepdims=True)
    t_n = textual_embed / jnp.linalg.norm(textual_embed, axis=-1, keepdims=True)
    similarity = v_n @ t_n.T                                          # (B, B)

    labels = jax.random.randint(k_lab, (B,), 0, NUM_CLASSES, jnp.int32)

    losses = loss_computation_forward(projection, visual_embed, textual_embed,
                                      similarity, labels)
    losses = jax.tree_util.tree_map(jax.block_until_ready, losses)

    # pure-JAX reference
    def _ref(proj, v, t, sim, lab):
        def ce(logits):
            lse = jax.scipy.special.logsumexp(logits, axis=-1)
            tgt = jnp.take_along_axis(logits, lab[:, None], axis=-1)[:, 0]
            return jnp.mean(lse - tgt)
        inst = ce(v @ proj) + ce(t @ proj)
        pos = lab[:, None] == lab[None, :]
        pos_term = jnp.log1p(jnp.exp(-10.0 * (sim - 0.6)))
        neg_term = jnp.log1p(jnp.exp(40.0 * (sim - 0.4)))
        align = (jnp.sum(jnp.where(pos, pos_term, 0.0))
                 + jnp.sum(jnp.where(pos, 0.0, neg_term))) * 2.0 / lab.shape[0]
        return inst, align

    ref_inst, ref_align = _ref(projection, visual_embed, textual_embed,
                               similarity, labels)
    assert jnp.allclose(losses["instance_loss"], ref_inst,
                        rtol=1e-4, atol=1e-4), (losses["instance_loss"], ref_inst)
    assert jnp.allclose(losses["global_align_loss"], ref_align,
                        rtol=1e-4, atol=1e-4), (losses["global_align_loss"], ref_align)

    print("KERNEL_OK")
</pallas_src>

<mosaic_0001>
module attributes {stable_mosaic.version = 11 : i64} {
  func.func @_fused_loss_kernel(%arg0: i32, %arg1: memref<16x1xi32, #tpu.memory_space<vmem>>, %arg2: memref<1x8xi32, #tpu.memory_space<vmem>>, %arg3: memref<16x32xf32, #tpu.memory_space<vmem>>, %arg4: memref<8x8xf32, #tpu.memory_space<vmem>>, %arg5: memref<32x16xf32, #tpu.memory_space<vmem>>, %arg6: memref<1x1xf32, #tpu.memory_space<smem>>, %arg7: memref<1x1xf32, #tpu.memory_space<smem>>, %arg8: memref<16x1xf32, #tpu.memory_space<vmem>>, %arg9: memref<16x1xf32, #tpu.memory_space<vmem>>, %arg10: memref<16x1xf32, #tpu.memory_space<vmem>>) attributes {dimension_semantics = [#tpu.dimension_semantics<arbitrary>], iteration_bounds = array<i64: 1>, scalar_prefetch = 0 : i64, scratch_operands = 3 : i64, tpu.core_type = #tpu.core_type<tc>, window_params = [{pipeline_mode = #tpu.pipeline_mode<synchronous>, transform_indices = @transform_0, window_bounds = array<i64: 16, 1>}, {pipeline_mode = #tpu.pipeline_mode<synchronous>, transform_indices = @transform_1, window_bounds = array<i64: 1, 8>}, {pipeline_mode = #tpu.pipeline_mode<synchronous>, transform_indices = @transform_2, window_bounds = array<i64: 16, 32>}, {pipeline_mode = #tpu.pipeline_mode<synchronous>, transform_indices = @transform_3, window_bounds = array<i64: 8, 8>}, {transform_indices = @transform_4, window_bounds = array<i64: 32, 16>}, {transform_indices = @transform_5, window_bounds = array<i64: 1, 1>}, {transform_indices = @transform_6, window_bounds = array<i64: 1, 1>}]} {
    %c0_i32 = arith.constant 0 : i32
    %0 = arith.cmpi eq, %arg0, %c0_i32 : i32
    %1 = arith.extui %0 : i1 to i32
    %c0_i32_0 = arith.constant 0 : i32
    %2 = arith.cmpi ne, %1, %c0_i32_0 : i32
    scf.if %2 {
      %cst_26 = arith.constant 0xFF800000 : f32
      %42 = vector.broadcast %cst_26 : f32 to vector<16x1xf32>
      %c0_27 = arith.constant 0 : index
      %c0_28 = arith.constant 0 : index
      %43 = vector.load %arg8[%c0_27, %c0_28] : memref<16x1xf32, #tpu.memory_space<vmem>>, vector<16x1xf32>
      tpu.vector_store %arg8[%c0_27, %c0_28], %42 {strides = array<i32>} : memref<16x1xf32, #tpu.memory_space<vmem>>, vector<16x1xf32>,
      %cst_29 = arith.constant 0.000000e+00 : f32
      %44 = vector.broadcast %cst_29 : f32 to vector<16x1xf32>
      %c0_30 = arith.constant 0 : index
      %c0_31 = arith.constant 0 : index
      %45 = vector.load %arg9[%c0_30, %c0_31] : memref<16x1xf32, #tpu.memory_space<vmem>>, vector<16x1xf32>
      tpu.vector_store %arg9[%c0_30, %c0_31], %44 {strides = array<i32>} : memref<16x1xf32, #tpu.memory_space<vmem>>, vector<16x1xf32>,
      %cst_32 = arith.constant 0.000000e+00 : f32
      %46 = vector.broadcast %cst_32 : f32 to vector<16x1xf32>
      %c0_33 = arith.constant 0 : index
      %c0_34 = arith.constant 0 : index
      %47 = vector.load %arg10[%c0_33, %c0_34] : memref<16x1xf32, #tpu.memory_space<vmem>>, vector<16x1xf32>
      tpu.vector_store %arg10[%c0_33, %c0_34], %46 {strides = array<i32>} : memref<16x1xf32, #tpu.memory_space<vmem>>, vector<16x1xf32>,
    } else {
    }
    %c0 = arith.constant 0 : index
    %c0_1 = arith.constant 0 : index
    %3 = vector.load %arg3[%c0, %c0_1] : memref<16x32xf32, #tpu.memory_space<vmem>>, vector<16x32xf32>
    %c0_2 = arith.constant 0 : index
    %c0_3 = arith.constant 0 : index
    %4 = vector.load %arg5[%c0_2, %c0_3] : memref<32x16xf32, #tpu.memory_space<vmem>>, vector<32x16xf32>
    %cst = arith.constant dense<0.000000e+00> : vector<16x16xf32>
    %5 = tpu.matmul %3, %4, %cst {dimension_numbers = #tpu.dot_dimension_numbers<[1], [0], [0], [1], [0, 0, 1, 1], [], []>} : vector<16x32xf32>, vector<32x16xf32>, vector<16x16xf32> -> vector<16x16xf32>
    %c0_4 = arith.constant 0 : index
    %c0_5 = arith.constant 0 : index
    %6 = vector.load %arg1[%c0_4, %c0_5] : memref<16x1xi32, #tpu.memory_space<vmem>>, vector<16x1xi32>
    %7 = tpu.iota {dimensions = array<i32: 1>} : vector<16x16xi32>
    %c16_i32 = arith.constant 16 : i32
    %8 = arith.muli %arg0, %c16_i32 : i32
    %9 = vector.broadcast %8 : i32 to vector<16x16xi32>
    %10 = arith.addi %7, %9 : vector<16x16xi32>
    %c0_6 = arith.constant 0 : index
    %c0_7 = arith.constant 0 : index
    %11 = vector.load %arg10[%c0_6, %c0_7] : memref<16x1xf32, #tpu.memory_space<vmem>>, vector<16x1xf32>
    %12 = vector.broadcast %6 : vector<16x1xi32> to vector<16x16xi32>
    %13 = arith.cmpi eq, %10, %12 : vector<16x16xi32>
    %cst_8 = arith.constant 0.000000e+00 : f32
    %14 = vector.broadcast %cst_8 : f32 to vector<16x16xf32>
    %15 = arith.select %13, %5, %14 : vector<16x16xi1>, vector<16x16xf32>
    %cst_9 = arith.constant dense<0.000000e+00> : vector<16xf32>
    %16 = vector.multi_reduction <add>, %15, %cst_9 [1] : vector<16x16xf32> to vector<16xf32>
    %17 = vector.shape_cast %16 : vector<16xf32> to vector<16x1xf32>
    %18 = arith.addf %11, %17 : vector<16x1xf32>
    %c0_10 = arith.constant 0 : index
    %c0_11 = arith.constant 0 : index
    %19 = vector.load %arg10[%c0_10, %c0_11] : memref<16x1xf32, #tpu.memory_space<vmem>>, vector<16x1xf32>
    tpu.vector_store %arg10[%c0_10, %c0_11], %18 {strides = array<i32>} : memref<16x1xf32, #tpu.memory_space<vmem>>, vector<16x1xf32>,
    %c0_12 = arith.constant 0 : index
    %c0_13 = arith.constant 0 : index
    %20 = vector.load %arg8[%c0_12, %c0_13] : memref<16x1xf32, #tpu.memory_space<vmem>>, vector<16x1xf32>
    %cst_14 = arith.constant dense<0xFF800000> : vector<16xf32>
    %21 = vector.multi_reduction <maximumf>, %5, %cst_14 [1] : vector<16x16xf32> to vector<16xf32>
    %22 = vector.shape_cast %21 : vector<16xf32> to vector<16x1xf32>
    %23 = arith.maximumf %20, %22 : vector<16x1xf32>
    %c0_15 = arith.constant 0 : index
    %c0_16 = arith.constant 0 : index
    %24 = vector.load %arg9[%c0_15, %c0_16] : memref<16x1xf32, #tpu.memory_space<vmem>>, vector<16x1xf32>
    %25 = arith.subf %20, %23 : vector<16x1xf32>
    %26 = math.exp %25 : vector<16x1xf32>
    %27 = arith.mulf %24, %26 : vector<16x1xf32>
    %28 = vector.broadcast %23 : vector<16x1xf32> to vector<16x16xf32>
    %29 = arith.subf %5, %28 : vector<16x16xf32>
    %30 = math.exp %29 : vector<16x16xf32>
    %cst_17 = arith.constant dense<0.000000e+00> : vector<16xf32>
    %31 = vector.multi_reduction <add>, %30, %cst_17 [1] : vector<16x16xf32> to vector<16xf32>
    %32 = vector.shape_cast %31 : vector<16xf32> to vector<16x1xf32>
    %33 = arith.addf %27, %32 : vector<16x1xf32>
    %c0_18 = arith.constant 0 : index
    %c0_19 = arith.constant 0 : index
    %34 = vector.load %arg9[%c0_18, %c0_19] : memref<16x1xf32, #tpu.memory_space<vmem>>, vector<16x1xf32>
    tpu.vector_store %arg9[%c0_18, %c0_19], %33 {strides = array<i32>} : memref<16x1xf32, #tpu.memory_space<vmem>>, vector<16x1xf32>,
    %c0_20 = arith.constant 0 : index
    %c0_21 = arith.constant 0 : index
    %35 = vector.load %arg8[%c0_20, %c0_21] : memref<16x1xf32, #tpu.memory_space<vmem>>, vector<16x1xf32>
    tpu.vector_store %arg8[%c0_20, %c0_21], %23 {strides = array<i32>} : memref<16x1xf32, #tpu.memory_space<vmem>>, vector<16x1xf32>,
    %c0_i32_22 = arith.constant 0 : i32
    %36 = arith.cmpi eq, %arg0, %c0_i32_22 : i32
    %37 = arith.extui %36 : i1 to i32
    %c0_i32_23 = arith.constant 0 : i32
    %38 = arith.cmpi ne, %37, %c0_i32_23 : i32
    scf.if %38 {
      %c0_26 = arith.constant 0 : index
      %c0_27 = arith.constant 0 : index
      %42 = vector.load %arg8[%c0_26, %c0_27] : memref<16x1xf32, #tpu.memory_space<vmem>>, vector<16x1xf32>
      %c0_28 = arith.constant 0 : index
      %c0_29 = arith.constant 0 : index
      %43 = vector.load %arg9[%c0_28, %c0_29] : memref<16x1xf32, #tpu.memory_space<vmem>>, vector<16x1xf32>
      %44 = math.log %43 : vector<16x1xf32>
      %45 = arith.addf %42, %44 : vector<16x1xf32>
      %c0_30 = arith.constant 0 : index
      %c0_31 = arith.constant 0 : index
      %46 = vector.load %arg10[%c0_30, %c0_31] : memref<16x1xf32, #tpu.memory_space<vmem>>, vector<16x1xf32>
      %47 = arith.subf %45, %46 : vector<16x1xf32>
      %48 = vector.shape_cast %47 : vector<16x1xf32> to vector<1x16x1xf32>
      %cst_32 = arith.constant dense<0.000000e+00> : vector<1xf32>
      %49 = vector.multi_reduction <add>, %48, %cst_32 [1, 2] : vector<1x16x1xf32> to vector<1xf32>
      %50 = vector.shape_cast %49 : vector<1xf32> to vector<1x1x1xf32>
      %51 = vector.extract %50[0, 0, 0] : f32 from vector<1x1x1xf32>
      %cst_33 = arith.constant 1.250000e-01 : f32
      %52 = arith.mulf %51, %cst_33 : f32
      %c0_34 = arith.constant 0 : index
      %c0_35 = arith.constant 0 : index
      %53 = memref.load %arg6[%c0_34, %c0_35] : memref<1x1xf32, #tpu.memory_space<smem>>
      memref.store %52, %arg6[%c0_34, %c0_35] : memref<1x1xf32, #tpu.memory_space<smem>>
    } else {
    }
    %c0_i32_24 = arith.constant 0 : i32
    %39 = arith.cmpi eq, %arg0, %c0_i32_24 : i32
    %40 = arith.extui %39 : i1 to i32
    %c0_i32_25 = arith.constant 0 : i32
    %41 = arith.cmpi ne, %40, %c0_i32_25 : i32
    scf.if %41 {
      %c0_26 = arith.constant 0 : index
      %c0_27 = arith.constant 0 : index
      %42 = vector.load %arg4[%c0_26, %c0_27] : memref<8x8xf32, #tpu.memory_space<vmem>>, vector<8x8xf32>
      %43 = vector.extract_strided_slice %6 {offsets = [0, 0], sizes = [8, 1], strides = [1, 1]} : vector<16x1xi32> to vector<8x1xi32>
      %c0_28 = arith.constant 0 : index
      %c0_29 = arith.constant 0 : index
      %44 = vector.load %arg2[%c0_28, %c0_29] : memref<1x8xi32, #tpu.memory_space<vmem>>, vector<1x8xi32>
      %45 = vector.broadcast %43 : vector<8x1xi32> to vector<8x8xi32>
      %46 = vector.broadcast %44 : vector<1x8xi32> to vector<8x8xi32>
      %47 = arith.cmpi eq, %45, %46 : vector<8x8xi32>
      %cst_30 = arith.constant 6.000000e-01 : f32
      %48 = vector.broadcast %cst_30 : f32 to vector<8x8xf32>
      %49 = arith.subf %42, %48 : vector<8x8xf32>
      %cst_31 = arith.constant -1.000000e+01 : f32
      %50 = vector.broadcast %cst_31 : f32 to vector<8x8xf32>
      %51 = arith.mulf %50, %49 : vector<8x8xf32>
      %cst_32 = arith.constant 4.000000e-01 : f32
      %52 = vector.broadcast %cst_32 : f32 to vector<8x8xf32>
      %53 = arith.subf %42, %52 : vector<8x8xf32>
      %cst_33 = arith.constant 4.000000e+01 : f32
      %54 = vector.broadcast %cst_33 : f32 to vector<8x8xf32>
      %55 = arith.mulf %54, %53 : vector<8x8xf32>
      %56 = arith.select %47, %51, %55 : vector<8x8xi1>, vector<8x8xf32>
      %cst_34 = arith.constant 0.000000e+00 : f32
      %57 = vector.broadcast %cst_34 : f32 to vector<8x8xf32>
      %58 = arith.maximumf %56, %57 : vector<8x8xf32>
      %59 = math.absf %56 : vector<8x8xf32>
      %cst_35 = arith.constant 0.000000e+00 : f32
      %60 = vector.broadcast %cst_35 : f32 to vector<8x8xf32>
      %61 = arith.subf %60, %59 : vector<8x8xf32>
      %62 = math.exp %61 : vector<8x8xf32>
      %cst_36 = arith.constant 1.000000e+00 : f32
      %63 = vector.broadcast %cst_36 : f32 to vector<8x8xf32>
      %64 = arith.addf %63, %62 : vector<8x8xf32>
      %65 = math.log %64 : vector<8x8xf32>
      %66 = arith.addf %58, %65 : vector<8x8xf32>
      %67 = vector.shape_cast %66 : vector<8x8xf32> to vector<1x8x8xf32>
      %cst_37 = arith.constant dense<0.000000e+00> : vector<1xf32>
      %68 = vector.multi_reduction <add>, %67, %cst_37 [1, 2] : vector<1x8x8xf32> to vector<1xf32>
      %69 = vector.shape_cast %68 : vector<1xf32> to vector<1x1x1xf32>
      %70 = vector.extract %69[0, 0, 0] : f32 from vector<1x1x1xf32>
      %cst_38 = arith.constant 2.500000e-01 : f32
      %71 = arith.mulf %70, %cst_38 : f32
      %c0_39 = arith.constant 0 : index
      %c0_40 = arith.constant 0 : index
      %72 = memref.load %arg7[%c0_39, %c0_40] : memref<1x1xf32, #tpu.memory_space<smem>>
      memref.store %71, %arg7[%c0_39, %c0_40] : memref<1x1xf32, #tpu.memory_space<smem>>
    } else {
    }
    return
  }
  func.func @transform_0(%arg0: i32) -> (i32, i32) {
    %c0_i32 = arith.constant 0 : i32
    %c0_i32_0 = arith.constant 0 : i32
    %c0_i32_1 = arith.constant 0 : i32
    return %c0_i32, %c0_i32_0 : i32, i32
  }
  func.func @transform_1(%arg0: i32) -> (i32, i32) {
    %c0_i32 = arith.constant 0 : i32
    %c0_i32_0 = arith.constant 0 : i32
    %c0_i32_1 = arith.constant 0 : i32
    return %c0_i32, %c0_i32_0 : i32, i32
  }
  func.func @transform_2(%arg0: i32) -> (i32, i32) {
    %c0_i32 = arith.constant 0 : i32
    %c0_i32_0 = arith.constant 0 : i32
    %c0_i32_1 = arith.constant 0 : i32
    return %c0_i32, %c0_i32_0 : i32, i32
  }
  func.func @transform_3(%arg0: i32) -> (i32, i32) {
    %c0_i32 = arith.constant 0 : i32
    %c0_i32_0 = arith.constant 0 : i32
    %c0_i32_1 = arith.constant 0 : i32
    return %c0_i32, %c0_i32_0 : i32, i32
  }
  func.func @transform_4(%arg0: i32) -> (i32, i32) {
    %c0_i32 = arith.constant 0 : i32
    %c0_i32_0 = arith.constant 0 : i32
    return %c0_i32, %arg0 : i32, i32
  }
  func.func @transform_5(%arg0: i32) -> (i32, i32) {
    %c0_i32 = arith.constant 0 : i32
    %c0_i32_0 = arith.constant 0 : i32
    %c0_i32_1 = arith.constant 0 : i32
    return %c0_i32, %c0_i32_0 : i32, i32
  }
  func.func @transform_6(%arg0: i32) -> (i32, i32) {
    %c0_i32 = arith.constant 0 : i32
    %c0_i32_0 = arith.constant 0 : i32
    %c0_i32_1 = arith.constant 0 : i32
    return %c0_i32, %c0_i32_0 : i32, i32
  }
}

</mosaic_0001>

<llo_original>
// kernel: tpu_custom_call.1
$region0: #{tpu_custom_call.1}
  #allocation0 [shape = 'u32[]', space=smem, size = 0x4, offset = 0x4, fixed_abs, tag = 'smem constant byte address 0x4 - core index']
  #allocation1 [shape = 'u32[72,128]{1,0:T(1,128)}', space=vmem, size = 0x9000, scoped, tag = 'internal scratch']
  #allocation2 [shape = 'f32[16,1]{1,0:T(8,128)}', space=vmem, size = 0x2000, scoped, tag = 'scratch operand']
  #allocation3 [shape = 'f32[16,1]{1,0:T(8,128)}', space=vmem, size = 0x2000, scoped, tag = 'scratch operand']
  #allocation4 [shape = 'f32[16,1]{1,0:T(8,128)}', space=vmem, size = 0x2000, scoped, tag = 'scratch operand']
  %s0 = inlined_call_operand.vmem [shape: s32[16,1], index: 0, kind: input, shape index: {}]
  %s1 = inlined_call_operand.vmem [shape: s32[1,8], index: 1, kind: input, shape index: {}]
  %s2 = inlined_call_operand.vmem [shape: f32[16,32], index: 2, kind: input, shape index: {}]
  %s3 = inlined_call_operand.vmem [shape: f32[8,8], index: 3, kind: input, shape index: {}]
  %s4 = inlined_call_operand.vmem [shape: f32[32,16], index: 4, kind: input, shape index: {}]
  %s5 = inlined_call_operand.hbm [shape: f32[1,1], index: 5, kind: output, shape index: {0}]
  %s6 = inlined_call_operand.hbm [shape: f32[1,1], index: 6, kind: output, shape index: {1}]
  %7 = xla_tuple %s5, %s6
  %s8 = sld [smem:[#allocation0]]
  $region46: #{tpu_custom_call.1} parent=0
    _
  %s10 = ssub.s32 1, %s8
  %s11 = scalar_select 0, %s10, %s8
  $region1: #{tpu_custom_call.1} parent=0
    #allocation5 [shape = 'u8[512]{0}', space=smem, size = 0x200, scoped, tag = 'output window, operand 0, single buffered']
    #allocation6 [shape = 's32[1]{0}', space=sflag, size = 0x4, scoped, tag = 'scoped memory for tpu_custom_call.1']
    #allocation7 [shape = 'u8[512]{0}', space=smem, size = 0x200, scoped, tag = 'output window, operand 1, single buffered']
    #allocation8 [shape = 's32[1]{0}', space=sflag, size = 0x4, scoped, tag = 'scoped memory for tpu_custom_call.1']
    %12 = vsyncpa [#allocation6], 0
    %13 = vsyncpa [#allocation8], 0
    // Predicated region
    $region2: #{tpu_custom_call.1} parent=1 // pred_check
      _
    $region3: #{tpu_custom_call.1} parent=1 // pred_check_branch
      %15 = sbr.rel (0) target = $region5
    $region4: #{tpu_custom_call.1} parent=1 // pred_region
      _
    $region5: #{tpu_custom_call.1} parent=1 // pred_fallthru
      _
    // Predicated region
    $region6: #{tpu_custom_call.1} parent=1 // pred_check
      _
    $region7: #{tpu_custom_call.1} parent=1 // pred_check_branch
      %17 = sbr.rel (0) target = $region9
    $region8: #{tpu_custom_call.1} parent=1 // pred_region
      _
    $region9: #{tpu_custom_call.1} parent=1 // pred_fallthru
      _
    // Predicated region
    $region10: #{tpu_custom_call.1} parent=1 // pred_check
      _
    $region11: #{tpu_custom_call.1} parent=1 // pred_check_branch
      %19 = sbr.rel (0) target = $region13
    $region12: #{tpu_custom_call.1} parent=1 // pred_region
      _
    $region13: #{tpu_custom_call.1} parent=1 // pred_fallthru
      _
    // Predicated region
    $region14: #{tpu_custom_call.1} parent=1 // pred_check
      _
    $region15: #{tpu_custom_call.1} parent=1 // pred_check_branch
      %21 = sbr.rel (0) target = $region17
    $region16: #{tpu_custom_call.1} parent=1 // pred_region
      _
    $region17: #{tpu_custom_call.1} parent=1 // pred_fallthru
      _
    // Predicated region
    $region18: #{tpu_custom_call.1} parent=1 // pred_check
      _
    $region19: #{tpu_custom_call.1} parent=1 // pred_check_branch
      %23 = sbr.rel (0) target = $region21
    $region20: #{tpu_custom_call.1} parent=1 // pred_region
      _
    $region21: #{tpu_custom_call.1} parent=1 // pred_fallthru
      _
    %p24 = scmp.eq.s32.totalorder 0, 0
    // Predicated region
    $region22: #{tpu_custom_call.1} parent=1 // pred_check
      %p25 = pneg %p24
    $region23: #{tpu_custom_call.1} parent=1 // pred_check_branch
      %27 = sbr.rel (%p25) target = $region25
    $region24: #{tpu_custom_call.1} parent=1 // pred_region
      %vm28 = vcmask 7168
      %29 = vst.msk [vmem:[#allocation2] sm:$0xff] %vm28, -inf
      %30 = vst.msk [vmem:[#allocation2 + $0x8] sm:$0xff] %vm28, -inf
      %31 = vst.msk [vmem:[#allocation3] sm:$0xff] %vm28, 0.0
      %32 = vst.msk [vmem:[#allocation3 + $0x8] sm:$0xff] %vm28, 0.0
      %33 = vst.msk [vmem:[#allocation4] sm:$0xff] %vm28, 0.0
      %34 = vst.msk [vmem:[#allocation4 + $0x8] sm:$0xff] %vm28, 0.0
    $region25: #{tpu_custom_call.1} parent=1 // pred_fallthru
      _
    %v35 = vld [vmem:[%s2] sm:$0xff]
    %v36 = vld [vmem:[%s2 + $0x8] sm:$0xff]
    %v37 = vld [vmem:[%s4] sm:$0xff]
    %v38 = vld [vmem:[%s4 + $0x8] sm:$0xff]
    %v39 = vld [vmem:[%s4 + $0x10] sm:$0xff]
    %v40 = vld [vmem:[%s4 + $0x18] sm:$0xff]
    %vm41 = vcmask 261120
    %v43 = vsel %vm41, %v35, 0
    %v46 = vsel %vm41, %v36, 0
    %48 = vmatpush.msra.mxu0 0.0
    %49 = vmatpush.msra.mxu0 0.0
    %50 = vmatpush.msra.mxu0 0.0
    %51 = vmatpush.msra.mxu0 0.0
    %52 = vmatpush.msra.mxu0 0.0
    %53 = vmatpush.msra.mxu0 0.0
    %54 = vmatpush.msra.mxu0 0.0
    %55 = vmatpush.msra.mxu0 0.0
    %56 = vmatpush.msra.mxu0 0.0
    %57 = vmatpush.msra.mxu0 0.0
    %58 = vmatpush.msra.mxu0 0.0
    %59 = vmatpush.msra.mxu0 0.0
    %60 = vmatpush.msra.mxu0 %v40
    %61 = vmatpush.msra.mxu0 %v39
    %62 = vmatpush.msra.mxu0 %v38
    %63 = vmatpush.msra.mxu0 %v37
    %64 = vmatmul.f32.gmra.mxu0 %v43
    %v65 = vpop.f32.mrf.mxu0
    %v66 = vadd.f32 0.0, %v65
    %67 = vmatmul.f32.gmra.mxu0 %v46
    %v68 = vpop.f32.mrf.mxu0
    %v69 = vadd.f32 0.0, %v68
    %70 = vdwg.mxu0
    %v71 = vld [vmem:[%s0] sm:$0xff]
    %v72 = vld [vmem:[%s0 + $0x8] sm:$0xff]
    %v73 = vlaneseq
    %v74 = vand.u32 %v73, 127
    %s75 = smul.u32 0, 16
    %v76 = vstv %s75
    %v77 = vadd.s32 %v74, %v76
    %v78 = vld [vmem:[#allocation4] sm:$0xff]
    %v79 = vld [vmem:[#allocation4 + $0x8] sm:$0xff]
    %80 = vset.pattern.permute.xlu0 0
    %81 = vperm.xlu0 %80, %v71
    %v82 = vpop.permute.xlu0 %81
    %83 = vset.pattern.permute.xlu0 0
    %84 = vperm.xlu0 %83, %v72
    %v85 = vpop.permute.xlu0 %84
    %vm86 = vcmp.eq.s32.totalorder %v77, %v82
    %vm87 = vcmp.eq.s32.totalorder %v77, %v85
    %v88 = vsel %vm86, %v66, 0.0
    %v89 = vsel %vm87, %v69, 0.0
    %vm90 = vcmask 130048
    %v91 = vsel %vm90, %v88, 0.0
    %92 = vadd.xlane.f32.xlu0 %v91
    %v93 = vpop.xlane.xlu0 %92
    %v94 = vsel %vm90, %v89, 0.0
    %95 = vadd.xlane.f32.xlu0 %v94
    %v96 = vpop.xlane.xlu0 %95
    %v97 = vadd.f32 %v78, %v93
    %v98 = vadd.f32 %v79, %v96
    %vm99 = vcmask 7168
    %100 = vst.msk [vmem:[#allocation4] sm:$0xff] %vm99, %v97
    %101 = vst.msk [vmem:[#allocation4 + $0x8] sm:$0xff] %vm99, %v98
    %v102 = vld [vmem:[#allocation2] sm:$0xff]
    %v103 = vld [vmem:[#allocation2 + $0x8] sm:$0xff]
    %v104 = vsel %vm90, %v66, -inf
    %105 = vmax.xlane.f32.xlu0 %v104
    %v106 = vpop.xlane.xlu0 %105
    %v107 = vsel %vm90, %v69, -inf
    %108 = vmax.xlane.f32.xlu0 %v107
    %v109 = vpop.xlane.xlu0 %108
    %v110 = vmax.f32 %v102, %v106
    %v111 = vmax.f32 %v103, %v109
    %v112 = vld [vmem:[#allocation3] sm:$0xff]
    %v113 = vld [vmem:[#allocation3 + $0x8] sm:$0xff]
    %v114 = vsub.f32 %v102, %v110
    %v115 = vsub.f32 %v103, %v111
    %v116 = vmul.f32 %v114, 1.442695
    %v117 = vpow.pop %v116
    %v118 = vmul.f32 %v115, 1.442695
    %v119 = vpow.pop %v118
    %v120 = vmul.f32 %v112, %v117
    %v121 = vmul.f32 %v113, %v119
    %123 = vset.pattern.permute.xlu0 0
    %124 = vperm.xlu0 %123, %v110
    %v125 = vpop.permute.xlu0 %124
    %128 = vset.pattern.permute.xlu0 0
    %129 = vperm.xlu0 %128, %v111
    %v130 = vpop.permute.xlu0 %129
    %v132 = vsub.f32 %v66, %v125
    %v133 = vsub.f32 %v69, %v130
    %v134 = vmul.f32 %v132, 1.442695
    %v135 = vpow.pop %v134
    %v136 = vmul.f32 %v133, 1.442695
    %v137 = vpow.pop %v136
    %v138 = vsel %vm90, %v135, 0.0
    %139 = vadd.xlane.f32.xlu0 %v138
    %v140 = vpop.xlane.xlu0 %139
    %v141 = vsel %vm90, %v137, 0.0
    %142 = vadd.xlane.f32.xlu0 %v141
    %v143 = vpop.xlane.xlu0 %142
    %v144 = vadd.f32 %v120, %v140
    %v145 = vadd.f32 %v121, %v143
    %146 = vst.msk [vmem:[#allocation3] sm:$0xff] %vm99, %v144
    %147 = vst.msk [vmem:[#allocation3 + $0x8] sm:$0xff] %vm99, %v145
    %148 = vst.msk [vmem:[#allocation2] sm:$0xff] %vm99, %v110
    %149 = vst.msk [vmem:[#allocation2 + $0x8] sm:$0xff] %vm99, %v111
    // Predicated region
    $region26: #{tpu_custom_call.1} parent=1 // pred_check
      %p150 = pneg %p24
    $region27: #{tpu_custom_call.1} parent=1 // pred_check_branch
      %152 = sbr.rel (%p150) target = $region29
    $region28: #{tpu_custom_call.1} parent=1 // pred_region
      %v153 = vld [vmem:[#allocation2] sm:$0xff]
      %v154 = vld [vmem:[#allocation2 + $0x8] sm:$0xff]
      %v155 = vld [vmem:[#allocation3] sm:$0xff]
      %v156 = vld [vmem:[#allocation3 + $0x8] sm:$0xff]
      %v157 = vlog2.pop %v155
      %v158 = vmul.f32 %v157, 0.6931472
      %v159 = vlog2.pop %v156
      %v160 = vmul.f32 %v159, 0.6931472
      %v161 = vadd.f32 %v153, %v158
      %v162 = vadd.f32 %v154, %v160
      %v163 = vld [vmem:[#allocation4] sm:$0xff]
      %v164 = vld [vmem:[#allocation4 + $0x8] sm:$0xff]
      %v165 = vsub.f32 %v161, %v163
      %v166 = vsub.f32 %v162, %v164
      %v167 = vsel %vm99, %v165, 0.0
      %v168 = vsel %vm99, %v166, 0.0
      %v169 = vadd.f32 %v167, %v168
      %170 = vadd.xlane.f32.xlu0 %v169
      %v171 = vpop.xlane.xlu0 %170
      %v172 = vrot.slane %v171, 4
      %v173 = vadd.f32 %v171, %v172
      %v174 = vrot.slane %v173, 2
      %v175 = vadd.f32 %v173, %v174
      %v176 = vrot.slane %v175, 1
      %v177 = vadd.f32 %v175, %v176
      %s178 = vtos %v177
      %s179 = smul.f32 %s178, 0.125
      %s180 = scalar_lea.smem [#allocation5], 0
      %181 = sst [smem:[%s180]] %s179
      %v182 = vld [vmem:[%s3] sm:$0xff]
      %v183 = vld [vmem:[%s1] sm:$0x1]
      %v184 = vperm.slane %v183, 0
      %vm185 = vcmp.eq.s32.totalorder %v82, %v184
      %v186 = vsub.f32 %v182, 0.6
      %v187 = vmul.f32 %v186, -10.0
      %v188 = vsub.f32 %v182, 0.4
      %v189 = vmul.f32 %v188, 40.0
      %v190 = vsel %vm185, %v187, %v189
      %v191 = vmax.f32 %v190, 0.0
      %v192 = vand.u32 2147483647, %v190
      %v193 = vsub.f32 0.0, %v192
      %v194 = vmul.f32 %v193, 1.442695
      %v195 = vpow.pop %v194
      %v196 = vadd.f32 %v195, 1.0
      %v197 = vlog2.pop %v196
      %v198 = vmul.f32 %v197, 0.6931472
      %v199 = vadd.f32 %v191, %v198
      %vm200 = vcmask 64512
      %v201 = vsel %vm200, %v199, 0.0
      %202 = vadd.xlane.f32.xlu0 %v201
      %v203 = vpop.xlane.xlu0 %202
      %v204 = vrot.slane %v203, 4
      %v205 = vadd.f32 %v203, %v204
      %v206 = vrot.slane %v205, 2
      %v207 = vadd.f32 %v205, %v206
      %v208 = vrot.slane %v207, 1
      %v209 = vadd.f32 %v207, %v208
      %s210 = vtos %v209
      %s211 = smul.f32 %s210, 0.25
      %s212 = scalar_lea.smem [#allocation7], 0
      %213 = sst [smem:[%s212]] %s211
    $region29: #{tpu_custom_call.1} parent=1 // pred_fallthru
      _
    // Predicated region
    $region30: #{tpu_custom_call.1} parent=1 // pred_check
      _
    $region31: #{tpu_custom_call.1} parent=1 // pred_check_branch
      %215 = sbr.rel (0) target = $region33
    $region32: #{tpu_custom_call.1} parent=1 // pred_region
      %217 = vsyncadd [#allocation6], 0
      %s219 = sshll.u32 %s5, 4
      %s220 = int_to_ptr.hbm [resolvable:$true] %s219
      %222 = dma.smem_to_hbm [#allocation5], 16, %s220, [#allocation6]
    $region33: #{tpu_custom_call.1} parent=1 // pred_fallthru
      _
    // Predicated region
    $region34: #{tpu_custom_call.1} parent=1 // pred_check
      _
    $region35: #{tpu_custom_call.1} parent=1 // pred_check_branch
      %224 = sbr.rel (0) target = $region37
    $region36: #{tpu_custom_call.1} parent=1 // pred_region
      %226 = vsyncadd [#allocation8], 0
      %s228 = sshll.u32 %s6, 4
      %s229 = int_to_ptr.hbm [resolvable:$true] %s228
      %231 = dma.smem_to_hbm [#allocation7], 16, %s229, [#allocation8]
    $region37: #{tpu_custom_call.1} parent=1 // pred_fallthru
      _
    // Predicated region
    $region38: #{tpu_custom_call.1} parent=1 // pred_check
      _
    $region39: #{tpu_custom_call.1} parent=1 // pred_check_branch
      %233 = sbr.rel (0) target = $region41
    $region40: #{tpu_custom_call.1} parent=1 // pred_region
      %235 = dma.done [#allocation6], 16
    $region41: #{tpu_custom_call.1} parent=1 // pred_fallthru
      _
    // Predicated region
    $region42: #{tpu_custom_call.1} parent=1 // pred_check
      _
    $region43: #{tpu_custom_call.1} parent=1 // pred_check_branch
      %237 = sbr.rel (0) target = $region45
    $region44: #{tpu_custom_call.1} parent=1 // pred_region
      %239 = dma.done [#allocation8], 16
    $region45: #{tpu_custom_call.1} parent=1 // pred_fallthru
      _
    %240 = sfence
    %241 = vsyncpa [#allocation6], 1
    %242 = vsyncpa [#allocation8], 1

</llo_original>
